<compile_context>
chip_gen: v7x
topology: tpu7x:2x2x1
jax: 0.10.0
libtpu: 0.0.40
codegen_flags: <defaults>
</compile_context>

<pallas_src>
import functools

import jax
import jax.numpy as jnp
from jax.experimental import pallas as pl
from jax.experimental.pallas import tpu as pltpu

LANES = 128
TARGET_BLOCK_BYTES = 2 * 1024 * 1024   # per-input-block VMEM target (2 MiB)


def _round_up(x, m):
    return (x + m - 1) // m * m


def _aeloss_kernel(o_ref, t_ref, out_abs_ref, out_sq_ref, *,
                   rows, block_r, n_blocks, tiles_per_shard, needs_mask):
    """Accumulate per-shard sum(|o-t|) and sum((o-t)^2) into the output tiles.

    o_ref, t_ref        : (block_r, LANES) input tiles (original dtype)
    out_abs_ref/out_sq_ref : (1, 8, LANES) f32 resident per-shard partial sums
    """
    i = pl.program_id(0)          # shard (TensorCore) axis  -- "parallel"
    j = pl.program_id(1)          # tile within the shard    -- "arbitrary"

    @pl.when(j == 0)
    def _():
        out_abs_ref[...] = jnp.zeros_like(out_abs_ref)
        out_sq_ref[...] = jnp.zeros_like(out_sq_ref)

    d = o_ref[...].astype(jnp.float32) - t_ref[...].astype(jnp.float32)

    def accumulate(dd):
        # Fold (block_r, LANES) -> (8, LANES) with pure vreg adds (VPU), then
        # accumulate into the resident output block.
        out_abs_ref[0] += jnp.abs(dd).reshape(block_r // 8, 8, LANES).sum(axis=0)
        out_sq_ref[0] += (dd * dd).reshape(block_r // 8, 8, LANES).sum(axis=0)

    if needs_mask:
        blk = i * tiles_per_shard + j

        @pl.when(blk == n_blocks - 1)
        def _():
            # Last block is partial: zero out rows past the true extent.
            row = jax.lax.broadcasted_iota(jnp.int32, (block_r, LANES), 0)
            dm = jnp.where((blk * block_r + row) < rows, d, 0.0)
            accumulate(dm)

        @pl.when(blk != n_blocks - 1)
        def _():
            accumulate(d)
    else:
        accumulate(d)


@functools.partial(jax.jit, static_argnames=("lambda1", "lambda2"))
def ae_loss(outputs, targets, *, lambda1: float, lambda2: float):
    """Pallas implementation of AELoss.forward:
       lambda1 * mean(|outputs - targets|) + lambda2 * mean((outputs - targets)^2)
    """
    assert outputs.shape == targets.shape
    n_elems = outputs.size

    o = outputs.reshape(-1)
    t = targets.reshape(-1)

    # Pad only when the flat length is not lane-aligned (with a minimum of one
    # (8, 128) tile).  In the common aligned case this is a no-op, so no extra
    # HBM pass is spent on padding.
    padded = max(_round_up(n_elems, LANES), 8 * LANES)
    pad = padded - n_elems
    if pad:
        o = jnp.pad(o, (0, pad))            # zero diff in the pad region
        t = jnp.pad(t, (0, pad))

    rows = padded // LANES
    o2 = o.reshape(rows, LANES)
    t2 = t.reshape(rows, LANES)

    # Block rows: ~2 MiB per input block (itemsize-aware), multiple of 8,
    # clamped to the full array for small inputs.
    itemsize = jnp.dtype(outputs.dtype).itemsize
    max_block_r = max(8, (TARGET_BLOCK_BYTES // (LANES * itemsize)) // 8 * 8)
    block_r = min(max_block_r, (rows // 8) * 8)
    n_blocks = pl.cdiv(rows, block_r)
    needs_mask = (rows % block_r) != 0        # last block is partial

    # Shard the stream across TensorCores when the split is clean
    # (2x on v7x; harmless serial split on single-TC v5e/v6e).
    n_shards = 2 if (n_blocks % 2 == 0 and n_blocks >= 2) else 1
    tiles_per_shard = n_blocks // n_shards

    kernel = functools.partial(
        _aeloss_kernel,
        rows=rows,
        block_r=block_r,
        n_blocks=n_blocks,
        tiles_per_shard=tiles_per_shard,
        needs_mask=needs_mask,
    )

    part_abs, part_sq = pl.pallas_call(
        kernel,
        out_shape=(
            jax.ShapeDtypeStruct((n_shards, 8, LANES), jnp.float32),
            jax.ShapeDtypeStruct((n_shards, 8, LANES), jnp.float32),
        ),
        grid_spec=pltpu.PrefetchScalarGridSpec(
            num_scalar_prefetch=0,
            grid=(n_shards, tiles_per_shard),
            in_specs=[
                pl.BlockSpec((block_r, LANES),
                             lambda i, j: (i * tiles_per_shard + j, 0)),
                pl.BlockSpec((block_r, LANES),
                             lambda i, j: (i * tiles_per_shard + j, 0)),
            ],
            out_specs=[
                pl.BlockSpec((1, 8, LANES), lambda i, j: (i, 0, 0)),
                pl.BlockSpec((1, 8, LANES), lambda i, j: (i, 0, 0)),
            ],
        ),
        compiler_params=pltpu.CompilerParams(
            dimension_semantics=("parallel", "arbitrary"),
        ),
    )(o2, t2)

    inv_n = 1.0 / float(n_elems)
    sum_abs = jnp.sum(part_abs)   # tiny (n_shards, 8, 128) reductions in XLA
    sum_sq = jnp.sum(part_sq)
    return lambda1 * sum_abs * inv_n + lambda2 * sum_sq * inv_n


if __name__ == "__main__":
    key = jax.random.PRNGKey(0)
    k1, k2, k3, k4 = jax.random.split(key, 4)

    lambda1, lambda2 = 0.5, 1.5

    # Small autoencoder-style shapes: NCHW = (2, 4, 16, 16).
    outputs = jax.random.normal(k1, (2, 4, 16, 16), dtype=jnp.float32)
    targets = jax.random.normal(k2, (2, 4, 16, 16), dtype=jnp.float32)

    loss = jax.block_until_ready(
        ae_loss(outputs, targets, lambda1=lambda1, lambda2=lambda2))

    # Pure-JAX reference (same semantics as nn.L1Loss / nn.MSELoss means).
    d = outputs - targets
    ref = lambda1 * jnp.mean(jnp.abs(d)) + lambda2 * jnp.mean(d * d)
    assert jnp.allclose(loss, ref, rtol=1e-5, atol=1e-6), (loss, ref)

    # Second case exercising the masked partial last block + 2-shard split.
    o_b = jax.random.normal(k3, (2, 4, 20, 16), dtype=jnp.float32)
    t_b = jax.random.normal(k4, (2, 4, 20, 16), dtype=jnp.float32)
    loss_b = jax.block_until_ready(
        ae_loss(o_b, t_b, lambda1=lambda1, lambda2=lambda2))
    d_b = o_b - t_b
    ref_b = lambda1 * jnp.mean(jnp.abs(d_b)) + lambda2 * jnp.mean(d_b * d_b)
    assert jnp.allclose(loss_b, ref_b, rtol=1e-5, atol=1e-6), (loss_b, ref_b)

    print("KERNEL_OK")
</pallas_src>

<mosaic_0001>
module attributes {stable_mosaic.version = 11 : i64} {
  func.func @_aeloss_kernel(%arg0: i32, %arg1: i32, %arg2: memref<16x128xf32, #tpu.memory_space<vmem>>, %arg3: memref<16x128xf32, #tpu.memory_space<vmem>>, %arg4: memref<1x8x128xf32, #tpu.memory_space<vmem>>, %arg5: memref<1x8x128xf32, #tpu.memory_space<vmem>>) attributes {dimension_semantics = [#tpu.dimension_semantics<parallel>, #tpu.dimension_semantics<arbitrary>], iteration_bounds = array<i64: 1, 1>, scalar_prefetch = 0 : i64, scratch_operands = 0 : i64, tpu.core_type = #tpu.core_type<tc>, window_params = [{transform_indices = @transform_0, window_bounds = array<i64: 16, 128>}, {transform_indices = @transform_1, window_bounds = array<i64: 16, 128>}, {transform_indices = @transform_2, window_bounds = array<i64: 1, 8, 128>}, {transform_indices = @transform_3, window_bounds = array<i64: 1, 8, 128>}]} {
    %c0_i32 = arith.constant 0 : i32
    %0 = arith.cmpi eq, %arg1, %c0_i32 : i32
    %1 = arith.extui %0 : i1 to i32
    %c0_i32_0 = arith.constant 0 : i32
    %2 = arith.cmpi ne, %1, %c0_i32_0 : i32
    scf.if %2 {
      %cst_17 = arith.constant 0.000000e+00 : f32
      %24 = vector.broadcast %cst_17 : f32 to vector<1x8x128xf32>
      %c0_18 = arith.constant 0 : index
      %c0_19 = arith.constant 0 : index
      %c0_20 = arith.constant 0 : index
      %25 = vector.load %arg4[%c0_18, %c0_19, %c0_20] : memref<1x8x128xf32, #tpu.memory_space<vmem>>, vector<1x8x128xf32>
      tpu.vector_store %arg4[%c0_18, %c0_19, %c0_20], %24 {strides = array<i32>} : memref<1x8x128xf32, #tpu.memory_space<vmem>>, vector<1x8x128xf32>,
      %cst_21 = arith.constant 0.000000e+00 : f32
      %26 = vector.broadcast %cst_21 : f32 to vector<1x8x128xf32>
      %c0_22 = arith.constant 0 : index
      %c0_23 = arith.constant 0 : index
      %c0_24 = arith.constant 0 : index
      %27 = vector.load %arg5[%c0_22, %c0_23, %c0_24] : memref<1x8x128xf32, #tpu.memory_space<vmem>>, vector<1x8x128xf32>
      tpu.vector_store %arg5[%c0_22, %c0_23, %c0_24], %26 {strides = array<i32>} : memref<1x8x128xf32, #tpu.memory_space<vmem>>, vector<1x8x128xf32>,
    } else {
    }
    %c0 = arith.constant 0 : index
    %c0_1 = arith.constant 0 : index
    %3 = vector.load %arg2[%c0, %c0_1] : memref<16x128xf32, #tpu.memory_space<vmem>>, vector<16x128xf32>
    %c0_2 = arith.constant 0 : index
    %c0_3 = arith.constant 0 : index
    %4 = vector.load %arg3[%c0_2, %c0_3] : memref<16x128xf32, #tpu.memory_space<vmem>>, vector<16x128xf32>
    %5 = arith.subf %3, %4 : vector<16x128xf32>
    %c0_4 = arith.constant 0 : index
    %c0_5 = arith.constant 0 : index
    %c0_6 = arith.constant 0 : index
    %6 = vector.load %arg4[%c0_4, %c0_5, %c0_6] : memref<1x8x128xf32, #tpu.memory_space<vmem>>, vector<1x8x128xf32>
    %7 = vector.shape_cast %6 : vector<1x8x128xf32> to vector<8x128xf32>
    %8 = math.absf %5 : vector<16x128xf32>
    %9 = vector.shape_cast %8 : vector<16x128xf32> to vector<2x8x128xf32>
    %cst = arith.constant dense<0.000000e+00> : vector<8x128xf32>
    %10 = vector.multi_reduction <add>, %9, %cst [0] : vector<2x8x128xf32> to vector<8x128xf32>
    %11 = arith.addf %7, %10 : vector<8x128xf32>
    %c0_7 = arith.constant 0 : index
    %c0_8 = arith.constant 0 : index
    %c0_9 = arith.constant 0 : index
    %12 = vector.load %arg4[%c0_7, %c0_8, %c0_9] : memref<1x8x128xf32, #tpu.memory_space<vmem>>, vector<1x8x128xf32>
    %13 = vector.shape_cast %12 : vector<1x8x128xf32> to vector<8x128xf32>
    %14 = vector.shape_cast %11 : vector<8x128xf32> to vector<1x8x128xf32>
    tpu.vector_store %arg4[%c0_7, %c0_8, %c0_9], %14 {strides = array<i32>} : memref<1x8x128xf32, #tpu.memory_space<vmem>>, vector<1x8x128xf32>,
    %c0_10 = arith.constant 0 : index
    %c0_11 = arith.constant 0 : index
    %c0_12 = arith.constant 0 : index
    %15 = vector.load %arg5[%c0_10, %c0_11, %c0_12] : memref<1x8x128xf32, #tpu.memory_space<vmem>>, vector<1x8x128xf32>
    %16 = vector.shape_cast %15 : vector<1x8x128xf32> to vector<8x128xf32>
    %17 = arith.mulf %5, %5 : vector<16x128xf32>
    %18 = vector.shape_cast %17 : vector<16x128xf32> to vector<2x8x128xf32>
    %cst_13 = arith.constant dense<0.000000e+00> : vector<8x128xf32>
    %19 = vector.multi_reduction <add>, %18, %cst_13 [0] : vector<2x8x128xf32> to vector<8x128xf32>
    %20 = arith.addf %16, %19 : vector<8x128xf32>
    %c0_14 = arith.constant 0 : index
    %c0_15 = arith.constant 0 : index
    %c0_16 = arith.constant 0 : index
    %21 = vector.load %arg5[%c0_14, %c0_15, %c0_16] : memref<1x8x128xf32, #tpu.memory_space<vmem>>, vector<1x8x128xf32>
    %22 = vector.shape_cast %21 : vector<1x8x128xf32> to vector<8x128xf32>
    %23 = vector.shape_cast %20 : vector<8x128xf32> to vector<1x8x128xf32>
    tpu.vector_store %arg5[%c0_14, %c0_15, %c0_16], %23 {strides = array<i32>} : memref<1x8x128xf32, #tpu.memory_space<vmem>>, vector<1x8x128xf32>,
    return
  }
  func.func @transform_0(%arg0: i32, %arg1: i32) -> (i32, i32) {
    %c1_i32 = arith.constant 1 : i32
    %0 = arith.muli %arg0, %c1_i32 : i32
    %1 = arith.addi %0, %arg1 : i32
    %c0_i32 = arith.constant 0 : i32
    %c0_i32_0 = arith.constant 0 : i32
    return %1, %c0_i32 : i32, i32
  }
  func.func @transform_1(%arg0: i32, %arg1: i32) -> (i32, i32) {
    %c1_i32 = arith.constant 1 : i32
    %0 = arith.muli %arg0, %c1_i32 : i32
    %1 = arith.addi %0, %arg1 : i32
    %c0_i32 = arith.constant 0 : i32
    %c0_i32_0 = arith.constant 0 : i32
    return %1, %c0_i32 : i32, i32
  }
  func.func @transform_2(%arg0: i32, %arg1: i32) -> (i32, i32, i32) {
    %c0_i32 = arith.constant 0 : i32
    %c0_i32_0 = arith.constant 0 : i32
    %c0_i32_1 = arith.constant 0 : i32
    return %arg0, %c0_i32, %c0_i32_0 : i32, i32, i32
  }
  func.func @transform_3(%arg0: i32, %arg1: i32) -> (i32, i32, i32) {
    %c0_i32 = arith.constant 0 : i32
    %c0_i32_0 = arith.constant 0 : i32
    %c0_i32_1 = arith.constant 0 : i32
    return %arg0, %c0_i32, %c0_i32_0 : i32, i32, i32
  }
}

</mosaic_0001>

<llo_original>
// kernel: ae_loss.1
$region0: #{ae_loss.1}
  #allocation0 [shape = 'u32[]', space=smem, size = 0x4, offset = 0x4, fixed_abs, tag = 'smem constant byte address 0x4 - core index']
  #allocation1 [shape = 'u32[144,128]{1,0:T(1,128)}', space=vmem, size = 0x12000, scoped, tag = 'internal scratch']
  %s0 = inlined_call_operand.vmem [shape: f32[16,128], index: 0, kind: input, shape index: {}]
  %s1 = inlined_call_operand.vmem [shape: f32[16,128], index: 1, kind: input, shape index: {}]
  %s2 = inlined_call_operand.vmem [shape: f32[1,8,128], index: 2, kind: output, shape index: {0}]
  %s3 = inlined_call_operand.vmem [shape: f32[1,8,128], index: 3, kind: output, shape index: {1}]
  %4 = xla_tuple %s2, %s3
  %s5 = sld [smem:[#allocation0]]
  $region30: #{ae_loss.1} parent=0
    _
  %s7 = ssub.s32 1, %s5
  %s8 = scalar_select 0, %s7, %s5
  // Predicated region
  $region2: #{ae_loss.1} parent=0 // pred_check
    _
  $region3: #{ae_loss.1} parent=0 // pred_check_branch
    %10 = sbr.rel (0) target = $region5
  $region4: #{ae_loss.1} parent=0 // pred_region
    %s11 = sadd.s32 0, 0
    %s12 = smul.u32 2, %s11
    %p13 = scmp.lt.s32.totalorder %s12, 1
    %s14 = scalar_select %p13, %s12, 1
    %s15 = smul.addr %s14, 8
    %s16 = scalar_lea.vmem %s0, %s15
    %s17 = sadd.s32 0, 0
    %s18 = smul.u32 2, %s17
  $region5: #{ae_loss.1} parent=0 // pred_fallthru
    _
  // Predicated region
  $region6: #{ae_loss.1} parent=0 // pred_check
    _
  $region7: #{ae_loss.1} parent=0 // pred_check_branch
    %20 = sbr.rel (0) target = $region9
  $region8: #{ae_loss.1} parent=0 // pred_region
    %s21 = sadd.s32 0, 0
    %s22 = smul.u32 2, %s21
    %p23 = scmp.lt.s32.totalorder %s22, 1
    %s24 = scalar_select %p23, %s22, 1
    %s25 = smul.addr %s24, 8
    %s26 = scalar_lea.vmem %s1, %s25
    %s27 = sadd.s32 0, 0
    %s28 = smul.u32 2, %s27
  $region9: #{ae_loss.1} parent=0 // pred_fallthru
    _
  %s29 = sadd.s32 0, 0
  %s30 = smul.u32 2, %s29
  %p31 = scmp.lt.s32.totalorder %s30, 1
  %s32 = scalar_select %p31, %s30, 1
  %s33 = smul.addr %s32, 8
  %s34 = scalar_lea.vmem %s0, %s33
  %s35 = sadd.s32 0, 0
  %s36 = smul.u32 2, %s35
  %p37 = scmp.lt.s32.totalorder %s36, 1
  %s38 = scalar_select %p37, %s36, 1
  %s39 = smul.addr %s38, 8
  %s40 = scalar_lea.vmem %s1, %s39
  %s41 = sadd.s32 0, 0
  %s42 = smul.u32 2, %s41
  %p43 = scmp.lt.s32.totalorder %s42, 1
  %s44 = scalar_select %p43, %s42, 1
  %s45 = smul.addr %s44, 8
  %s46 = scalar_lea.vmem %s0, %s45
  %s47 = sadd.s32 0, 0
  %s48 = smul.u32 2, %s47
  %s49 = sadd.s32 0, 0
  %s50 = smul.u32 2, %s49
  %p51 = scmp.lt.s32.totalorder %s50, 1
  %s52 = scalar_select %p51, %s50, 1
  %s53 = smul.addr %s52, 8
  %s54 = scalar_lea.vmem %s1, %s53
  %s55 = sadd.s32 0, 0
  %s56 = smul.u32 2, %s55
  %p57 = scmp.eq.s32.totalorder 0, 0
  // Predicated region
  $region10: #{ae_loss.1} parent=0 // pred_check
    %p58 = pneg %p57
  $region11: #{ae_loss.1} parent=0 // pred_check_branch
    %60 = sbr.rel (%p58) target = $region13
  $region12: #{ae_loss.1} parent=0 // pred_region
    %61 = vst [vmem:[%s2] sm:$0xff] 0.0
    %62 = vst [vmem:[%s3] sm:$0xff] 0.0
  $region13: #{ae_loss.1} parent=0 // pred_fallthru
    _
  %v63 = vld [vmem:[%s46] sm:$0xff]
  %v64 = vld [vmem:[%s46 + $0x8] sm:$0xff]
  %v65 = vld [vmem:[%s54] sm:$0xff]
  %v66 = vld [vmem:[%s54 + $0x8] sm:$0xff]
  %v67 = vsub.f32 %v63, %v65
  %v68 = vsub.f32 %v64, %v66
  %v69 = vld [vmem:[%s2] sm:$0xff]
  %v70 = vand.u32 2147483647, %v67
  %v71 = vand.u32 2147483647, %v68
  %v72 = vadd.f32 %v70, %v71
  %v73 = vadd.f32 %v69, %v72
  %74 = vst [vmem:[%s2] sm:$0xff] %v73
  %v75 = vld [vmem:[%s3] sm:$0xff]
  %v76 = vmul.f32 %v67, %v67
  %v77 = vmul.f32 %v68, %v68
  %v78 = vadd.f32 %v76, %v77
  %v79 = vadd.f32 %v75, %v78
  %80 = vst [vmem:[%s3] sm:$0xff] %v79
  // Predicated region
  $region14: #{ae_loss.1} parent=0 // pred_check
    _
  $region15: #{ae_loss.1} parent=0 // pred_check_branch
    %82 = sbr.rel (0) target = $region17
  $region16: #{ae_loss.1} parent=0 // pred_region
    _
  $region17: #{ae_loss.1} parent=0 // pred_fallthru
    _
  // Predicated region
  $region18: #{ae_loss.1} parent=0 // pred_check
    _
  $region19: #{ae_loss.1} parent=0 // pred_check_branch
    %84 = sbr.rel (0) target = $region21
  $region20: #{ae_loss.1} parent=0 // pred_region
    _
  $region21: #{ae_loss.1} parent=0 // pred_fallthru
    _
  // Predicated region
  $region22: #{ae_loss.1} parent=0 // pred_check
    _
  $region23: #{ae_loss.1} parent=0 // pred_check_branch
    %86 = sbr.rel (0) target = $region25
  $region24: #{ae_loss.1} parent=0 // pred_region
    _
  $region25: #{ae_loss.1} parent=0 // pred_fallthru
    _
  // Predicated region
  $region26: #{ae_loss.1} parent=0 // pred_check
    _
  $region27: #{ae_loss.1} parent=0 // pred_check_branch
    %88 = sbr.rel (0) target = $region29
  $region28: #{ae_loss.1} parent=0 // pred_region
    _
  $region29: #{ae_loss.1} parent=0 // pred_fallthru
    _

</llo_original>
